<compile_context>
chip_gen: v5e
topology: v5e:2x2
jax: 0.10.0
libtpu: 0.0.40
codegen_flags: <defaults>
</compile_context>

<pallas_src>
import functools

import jax
import jax.numpy as jnp
from jax.experimental import pallas as pl
from jax.experimental.pallas import tpu as pltpu


def _round_up(x, m):
    return (x + m - 1) // m * m


def _disc_kernel(x_ref, w1_ref, b1_ref, w2_ref, b2_ref, w3_ref, b3_ref, o_ref):
    dt = w1_ref.dtype
    # x arrives in f32; cast to the matmul dtype here (free VPU filler in a mem-bound regime).
    x = x_ref[...].astype(dt)
    # fc1 + relu  (bf16 MXU inputs, f32 accumulation, f32 elementwise)
    h1 = jnp.dot(x, w1_ref[...], preferred_element_type=jnp.float32) + b1_ref[...]
    h1 = jnp.maximum(h1, 0.0)
    # fc2 + relu
    h2 = jnp.dot(h1.astype(dt), w2_ref[...], preferred_element_type=jnp.float32) + b2_ref[...]
    h2 = jnp.maximum(h2, 0.0)
    # fc3 + sigmoid (output features padded to 128 lanes -> unmasked full-width stores)
    logits = jnp.dot(h2.astype(dt), w3_ref[...], preferred_element_type=jnp.float32) + b3_ref[...]
    o_ref[...] = jax.nn.sigmoid(logits).astype(o_ref.dtype)


def _vmem_estimate(tb, dp, hp, op, w_itemsize):
    """Upper bound on VMEM use; weights/biases counted x2 (constant-index specs still get
    double buffers from the pipeliner)."""
    x_bufs = 2 * tb * dp * 4                                   # double-buffered f32 x tiles
    o_bufs = 2 * tb * op * 4                                   # double-buffered f32 out tiles
    weights = 2 * (dp * hp + hp * hp + hp * op) * w_itemsize   # x2: double-buffered
    biases = 2 * (2 * hp + op) * 4
    # in-body temporaries: bf16 casts of x/h1/h2 + f32 h1/h2/logits
    activ = tb * (dp * w_itemsize + hp * (8 + 2 * w_itemsize) + op * 4)
    return x_bufs + o_bufs + weights + biases + activ


def _vmem_budget_and_cap():
    """Generation-aware VMEM budget (for tile sizing) and vmem_limit cap."""
    cap_bytes = None
    try:
        cap_bytes = int(pltpu.get_tpu_info().vmem_capacity_bytes)
    except Exception:
        cap_bytes = None
    if cap_bytes is not None and cap_bytes >= (100 << 20):
        return 96 << 20, 100 << 20        # v5e / v6e: 128 MiB physical
    return 48 << 20, 56 << 20             # v7x (64 MiB) or unknown: stay conservative


def _pick_batch_tile(batch, dp, hp, op, w_itemsize, budget):
    # Single tile for batches up to 2048 (rounded to bf16 sublane packing of 16),
    # 2048-row tiles for larger batches; shrink only if the VMEM budget is exceeded.
    if batch <= 2048:
        tb = _round_up(max(batch, 1), 16)
    else:
        tb = 2048
    while tb > 16 and _vmem_estimate(tb, dp, hp, op, w_itemsize) > budget:
        tb = max(16, _round_up(tb // 2, 16))
    # Multi-tile grids: keep TB a multiple of 256 so the MXU LHS cadence stays full (v6e/v7x).
    if batch > tb and tb >= 256:
        tb = (tb // 256) * 256
    return tb


def _pad2(a, rows, cols, dtype):
    a = a.astype(dtype)
    return jnp.pad(a, ((0, rows - a.shape[0]), (0, cols - a.shape[1])))


def prepare_params(params, matmul_dtype=jnp.bfloat16):
    """Pad feature dims to multiples of 128 and cast matmul operands ONCE (hoisted out of the
    per-forward path). Weights are (in_features, out_features); biases (1, out_features)."""
    D, H = params["w1"].shape
    O = params["w3"].shape[1]
    Dp, Hp, Op = _round_up(D, 128), _round_up(H, 128), _round_up(O, 128)
    return {
        "w1": _pad2(params["w1"], Dp, Hp, matmul_dtype),
        "b1": _pad2(params["b1"], 1, Hp, jnp.float32),
        "w2": _pad2(params["w2"], Hp, Hp, matmul_dtype),
        "b2": _pad2(params["b2"], 1, Hp, jnp.float32),
        "w3": _pad2(params["w3"], Hp, Op, matmul_dtype),
        "b3": _pad2(params["b3"], 1, Op, jnp.float32),
    }


@functools.partial(jax.jit, static_argnames=("output_size",))
def discriminator_forward(x, padded_params, output_size):
    """x: (B, C, H, W) float32. padded_params: output of prepare_params()."""
    B = x.shape[0]
    x_flat = x.reshape(B, -1).astype(jnp.float32)   # same as torch x.view(B, -1)
    D = x_flat.shape[1]
    Dp, Hp = padded_params["w1"].shape
    Op = padded_params["w3"].shape[1]
    w_itemsize = jnp.dtype(padded_params["w1"].dtype).itemsize

    budget, limit_cap = _vmem_budget_and_cap()
    TB = _pick_batch_tile(B, Dp, Hp, Op, w_itemsize, budget)
    Bp = _round_up(B, TB)
    grid = (Bp // TB,)

    # Only pad x when actually needed (batch remainder / D not a multiple of 128);
    # zero rows/columns contribute 0 through matmul+ReLU and are sliced away at the end.
    if Bp != B or Dp != D:
        x_flat = jnp.pad(x_flat, ((0, Bp - B), (0, Dp - D)))

    resident = lambda shape: pl.BlockSpec(shape, lambda i: (0,) * len(shape))

    est = _vmem_estimate(TB, Dp, Hp, Op, w_itemsize)
    vmem_limit = int(min(max(int(1.25 * est) + (4 << 20), 32 << 20), limit_cap))

    flops = 2 * Bp * (Dp * Hp + Hp * Hp + Hp * Op)
    bytes_accessed = (Bp * Dp * 4
                      + (Dp * Hp + Hp * Hp + Hp * Op) * w_itemsize
                      + (2 * Hp + Op) * 4
                      + Bp * Op * 4)
    cost = pl.CostEstimate(flops=flops, transcendentals=Bp * Op,
                           bytes_accessed=int(bytes_accessed))

    out = pl.pallas_call(
        _disc_kernel,
        out_shape=jax.ShapeDtypeStruct((Bp, Op), jnp.float32),
        grid_spec=pltpu.PrefetchScalarGridSpec(
            num_scalar_prefetch=0,
            grid=grid,
            in_specs=[
                pl.BlockSpec((TB, Dp), lambda i: (i, 0)),   # x: batch-tiled, pipelined (f32)
                resident((Dp, Hp)), resident((1, Hp)),      # w1, b1: VMEM-resident
                resident((Hp, Hp)), resident((1, Hp)),      # w2, b2
                resident((Hp, Op)), resident((1, Op)),      # w3, b3
            ],
            out_specs=pl.BlockSpec((TB, Op), lambda i: (i, 0)),
        ),
        compiler_params=pltpu.CompilerParams(
            dimension_semantics=("parallel",),
            vmem_limit_bytes=vmem_limit,
        ),
        cost_estimate=cost,
    )(x_flat,
      padded_params["w1"], padded_params["b1"],
      padded_params["w2"], padded_params["b2"],
      padded_params["w3"], padded_params["b3"])

    return out[:B, :output_size]


def init_params(key, input_size, hidden_size, output_size):
    """Mimics nn.Linear's uniform(-1/sqrt(fan_in), 1/sqrt(fan_in)).
    Weights stored transposed, i.e. (in_features, out_features); biases (1, out)."""
    ks = jax.random.split(key, 6)

    def linear(kw, kb, fan_in, fan_out):
        bound = 1.0 / jnp.sqrt(jnp.float32(fan_in))
        w = jax.random.uniform(kw, (fan_in, fan_out), jnp.float32, -bound, bound)
        b = jax.random.uniform(kb, (1, fan_out), jnp.float32, -bound, bound)
        return w, b

    w1, b1 = linear(ks[0], ks[1], input_size, hidden_size)
    w2, b2 = linear(ks[2], ks[3], hidden_size, hidden_size)
    w3, b3 = linear(ks[4], ks[5], hidden_size, output_size)
    return {"w1": w1, "b1": b1, "w2": w2, "b2": b2, "w3": w3, "b3": b3}


def _reference_forward(x, params, matmul_dtype):
    """Pure-JAX reference mirroring the kernel's bf16-matmul / f32-elementwise recipe."""
    B = x.shape[0]
    xf = x.reshape(B, -1).astype(jnp.float32)
    c = lambda a: a.astype(matmul_dtype)
    h1 = jnp.maximum(
        jnp.dot(c(xf), c(params["w1"]), preferred_element_type=jnp.float32) + params["b1"], 0.0)
    h2 = jnp.maximum(
        jnp.dot(c(h1), c(params["w2"]), preferred_element_type=jnp.float32) + params["b2"], 0.0)
    logits = jnp.dot(c(h2), c(params["w3"]), preferred_element_type=jnp.float32) + params["b3"]
    return jax.nn.sigmoid(logits)


def _reference_forward_f32(x, params):
    """Pure f32 reference = original PyTorch module semantics."""
    B = x.shape[0]
    xf = x.reshape(B, -1).astype(jnp.float32)
    h1 = jnp.maximum(xf @ params["w1"] + params["b1"], 0.0)
    h2 = jnp.maximum(h1 @ params["w2"] + params["b2"], 0.0)
    return jax.nn.sigmoid(h2 @ params["w3"] + params["b3"])


if __name__ == "__main__":
    key = jax.random.PRNGKey(0)
    k_x, k_p = jax.random.split(key)

    # Small shapes: batch=2, channels=4, spatial=16 -> input_size = 1024
    B, C, H, W = 2, 4, 16, 16
    input_size = C * H * W
    hidden_size = 32
    output_size = 1

    x = jax.random.normal(k_x, (B, C, H, W), jnp.float32)
    params = init_params(k_p, input_size, hidden_size, output_size)

    padded_params = prepare_params(params)          # pad + bf16-cast once, reused per forward
    out = discriminator_forward(x, padded_params, output_size)
    out = jax.block_until_ready(out)
    assert out.shape == (B, output_size)

    # Tight check against a reference that mirrors the kernel's mixed precision.
    ref_mixed = _reference_forward(x, params, jnp.bfloat16)
    assert jnp.allclose(out, ref_mixed, atol=1e-3, rtol=1e-3), (
        f"max err vs mixed-precision ref: {jnp.max(jnp.abs(out - ref_mixed))}")

    # Loose check against the pure-f32 PyTorch-semantics reference.
    ref_f32 = _reference_forward_f32(x, params)
    assert jnp.allclose(out, ref_f32, atol=3e-2, rtol=3e-2), (
        f"max err vs f32 ref: {jnp.max(jnp.abs(out - ref_f32))}")

    print("KERNEL_OK")
</pallas_src>

<mosaic_0001>
module attributes {stable_mosaic.version = 11 : i64} {
  func.func @_disc_kernel(%arg0: i32, %arg1: memref<16x1024xf32, #tpu.memory_space<vmem>>, %arg2: memref<1024x128xbf16, #tpu.memory_space<vmem>>, %arg3: memref<1x128xf32, #tpu.memory_space<vmem>>, %arg4: memref<128x128xbf16, #tpu.memory_space<vmem>>, %arg5: memref<1x128xf32, #tpu.memory_space<vmem>>, %arg6: memref<128x128xbf16, #tpu.memory_space<vmem>>, %arg7: memref<1x128xf32, #tpu.memory_space<vmem>>, %arg8: memref<16x128xf32, #tpu.memory_space<vmem>>) attributes {dimension_semantics = [#tpu.dimension_semantics<parallel>], iteration_bounds = array<i64: 1>, scalar_prefetch = 0 : i64, scratch_operands = 0 : i64, tpu.core_type = #tpu.core_type<tc>, window_params = [{transform_indices = @transform_0, window_bounds = array<i64: 16, 1024>}, {pipeline_mode = #tpu.pipeline_mode<synchronous>, transform_indices = @transform_1, window_bounds = array<i64: 1024, 128>}, {pipeline_mode = #tpu.pipeline_mode<synchronous>, transform_indices = @transform_2, window_bounds = array<i64: 1, 128>}, {pipeline_mode = #tpu.pipeline_mode<synchronous>, transform_indices = @transform_3, window_bounds = array<i64: 128, 128>}, {pipeline_mode = #tpu.pipeline_mode<synchronous>, transform_indices = @transform_4, window_bounds = array<i64: 1, 128>}, {pipeline_mode = #tpu.pipeline_mode<synchronous>, transform_indices = @transform_5, window_bounds = array<i64: 128, 128>}, {pipeline_mode = #tpu.pipeline_mode<synchronous>, transform_indices = @transform_6, window_bounds = array<i64: 1, 128>}, {transform_indices = @transform_7, window_bounds = array<i64: 16, 128>}]} {
    %c0 = arith.constant 0 : index
    %c0_0 = arith.constant 0 : index
    %0 = vector.load %arg1[%c0, %c0_0] : memref<16x1024xf32, #tpu.memory_space<vmem>>, vector<16x1024xf32>
    %1 = arith.truncf %0 : vector<16x1024xf32> to vector<16x1024xbf16>
    %c0_1 = arith.constant 0 : index
    %c0_2 = arith.constant 0 : index
    %2 = vector.load %arg2[%c0_1, %c0_2] : memref<1024x128xbf16, #tpu.memory_space<vmem>>, vector<1024x128xbf16>
    %cst = arith.constant dense<0.000000e+00> : vector<16x128xf32>
    %3 = tpu.matmul %1, %2, %cst {dimension_numbers = #tpu.dot_dimension_numbers<[1], [0], [0], [1], [0, 0, 1, 1], [], []>} : vector<16x1024xbf16>, vector<1024x128xbf16>, vector<16x128xf32> -> vector<16x128xf32>
    %c0_3 = arith.constant 0 : index
    %c0_4 = arith.constant 0 : index
    %4 = vector.load %arg3[%c0_3, %c0_4] : memref<1x128xf32, #tpu.memory_space<vmem>>, vector<1x128xf32>
    %5 = vector.broadcast %4 : vector<1x128xf32> to vector<16x128xf32>
    %6 = arith.addf %3, %5 : vector<16x128xf32>
    %cst_5 = arith.constant 0.000000e+00 : f32
    %7 = vector.broadcast %cst_5 : f32 to vector<16x128xf32>
    %8 = arith.maximumf %6, %7 : vector<16x128xf32>
    %9 = arith.truncf %8 : vector<16x128xf32> to vector<16x128xbf16>
    %c0_6 = arith.constant 0 : index
    %c0_7 = arith.constant 0 : index
    %10 = vector.load %arg4[%c0_6, %c0_7] : memref<128x128xbf16, #tpu.memory_space<vmem>>, vector<128x128xbf16>
    %cst_8 = arith.constant dense<0.000000e+00> : vector<16x128xf32>
    %11 = tpu.matmul %9, %10, %cst_8 {dimension_numbers = #tpu.dot_dimension_numbers<[1], [0], [0], [1], [0, 0, 1, 1], [], []>} : vector<16x128xbf16>, vector<128x128xbf16>, vector<16x128xf32> -> vector<16x128xf32>
    %c0_9 = arith.constant 0 : index
    %c0_10 = arith.constant 0 : index
    %12 = vector.load %arg5[%c0_9, %c0_10] : memref<1x128xf32, #tpu.memory_space<vmem>>, vector<1x128xf32>
    %13 = vector.broadcast %12 : vector<1x128xf32> to vector<16x128xf32>
    %14 = arith.addf %11, %13 : vector<16x128xf32>
    %cst_11 = arith.constant 0.000000e+00 : f32
    %15 = vector.broadcast %cst_11 : f32 to vector<16x128xf32>
    %16 = arith.maximumf %14, %15 : vector<16x128xf32>
    %17 = arith.truncf %16 : vector<16x128xf32> to vector<16x128xbf16>
    %c0_12 = arith.constant 0 : index
    %c0_13 = arith.constant 0 : index
    %18 = vector.load %arg6[%c0_12, %c0_13] : memref<128x128xbf16, #tpu.memory_space<vmem>>, vector<128x128xbf16>
    %cst_14 = arith.constant dense<0.000000e+00> : vector<16x128xf32>
    %19 = tpu.matmul %17, %18, %cst_14 {dimension_numbers = #tpu.dot_dimension_numbers<[1], [0], [0], [1], [0, 0, 1, 1], [], []>} : vector<16x128xbf16>, vector<128x128xbf16>, vector<16x128xf32> -> vector<16x128xf32>
    %c0_15 = arith.constant 0 : index
    %c0_16 = arith.constant 0 : index
    %20 = vector.load %arg7[%c0_15, %c0_16] : memref<1x128xf32, #tpu.memory_space<vmem>>, vector<1x128xf32>
    %21 = vector.broadcast %20 : vector<1x128xf32> to vector<16x128xf32>
    %22 = arith.addf %19, %21 : vector<16x128xf32>
    %23 = arith.negf %22 : vector<16x128xf32>
    %24 = math.exp %23 : vector<16x128xf32>
    %cst_17 = arith.constant 1.000000e+00 : f32
    %25 = vector.broadcast %cst_17 : f32 to vector<16x128xf32>
    %26 = arith.addf %25, %24 : vector<16x128xf32>
    %27 = arith.divf %25, %26 : vector<16x128xf32>
    %c0_18 = arith.constant 0 : index
    %c0_19 = arith.constant 0 : index
    %28 = vector.load %arg8[%c0_18, %c0_19] : memref<16x128xf32, #tpu.memory_space<vmem>>, vector<16x128xf32>
    tpu.vector_store %arg8[%c0_18, %c0_19], %27 {strides = array<i32>} : memref<16x128xf32, #tpu.memory_space<vmem>>, vector<16x128xf32>,
    return
  }
  func.func @transform_0(%arg0: i32) -> (i32, i32) {
    %c0_i32 = arith.constant 0 : i32
    %c0_i32_0 = arith.constant 0 : i32
    return %arg0, %c0_i32 : i32, i32
  }
  func.func @transform_1(%arg0: i32) -> (i32, i32) {
    %c0_i32 = arith.constant 0 : i32
    %c0_i32_0 = arith.constant 0 : i32
    %c0_i32_1 = arith.constant 0 : i32
    return %c0_i32, %c0_i32_0 : i32, i32
  }
  func.func @transform_2(%arg0: i32) -> (i32, i32) {
    %c0_i32 = arith.constant 0 : i32
    %c0_i32_0 = arith.constant 0 : i32
    %c0_i32_1 = arith.constant 0 : i32
    return %c0_i32, %c0_i32_0 : i32, i32
  }
  func.func @transform_3(%arg0: i32) -> (i32, i32) {
    %c0_i32 = arith.constant 0 : i32
    %c0_i32_0 = arith.constant 0 : i32
    %c0_i32_1 = arith.constant 0 : i32
    return %c0_i32, %c0_i32_0 : i32, i32
  }
  func.func @transform_4(%arg0: i32) -> (i32, i32) {
    %c0_i32 = arith.constant 0 : i32
    %c0_i32_0 = arith.constant 0 : i32
    %c0_i32_1 = arith.constant 0 : i32
    return %c0_i32, %c0_i32_0 : i32, i32
  }
  func.func @transform_5(%arg0: i32) -> (i32, i32) {
    %c0_i32 = arith.constant 0 : i32
    %c0_i32_0 = arith.constant 0 : i32
    %c0_i32_1 = arith.constant 0 : i32
    return %c0_i32, %c0_i32_0 : i32, i32
  }
  func.func @transform_6(%arg0: i32) -> (i32, i32) {
    %c0_i32 = arith.constant 0 : i32
    %c0_i32_0 = arith.constant 0 : i32
    %c0_i32_1 = arith.constant 0 : i32
    return %c0_i32, %c0_i32_0 : i32, i32
  }
  func.func @transform_7(%arg0: i32) -> (i32, i32) {
    %c0_i32 = arith.constant 0 : i32
    %c0_i32_0 = arith.constant 0 : i32
    return %arg0, %c0_i32 : i32, i32
  }
}

</mosaic_0001>

<llo_original>
// kernel: discriminator_forward.1
$region0: #{discriminator_forward.1}
  #allocation0 [shape = 'u32[]', space=smem, size = 0x4, offset = 0x4, fixed_abs, tag = 'smem constant byte address 0x4 - core index']
  #allocation1 [shape = 'u32[72,128]{1,0:T(1,128)}', space=vmem, size = 0x9000, scoped, tag = 'internal scratch']
  %s0 = inlined_call_operand.vmem [shape: f32[16,1024], index: 0, kind: input, shape index: {}]
  %s1 = inlined_call_operand.hbm [shape: bf16[1024,128], index: 1, kind: input, shape index: {}]
  %s2 = inlined_call_operand.vmem [shape: f32[1,128], index: 2, kind: input, shape index: {}]
  %s3 = inlined_call_operand.vmem [shape: bf16[128,128], index: 3, kind: input, shape index: {}]
  %s4 = inlined_call_operand.vmem [shape: f32[1,128], index: 4, kind: input, shape index: {}]
  %s5 = inlined_call_operand.vmem [shape: bf16[128,128], index: 5, kind: input, shape index: {}]
  %s6 = inlined_call_operand.vmem [shape: f32[1,128], index: 6, kind: input, shape index: {}]
  %s7 = inlined_call_operand.vmem [shape: f32[16,128], index: 7, kind: output, shape index: {}]
  %s8 = sld [smem:[#allocation0]]
  $region42: #{discriminator_forward.1} parent=0
    _
  %s10 = ssub.s32 1, %s8
  %s11 = scalar_select 0, %s10, %s8
  $region1: #{discriminator_forward.1} parent=0
    #allocation2 [shape = 'u8[262144]{0}', space=vmem, size = 0x40000, scoped, tag = 'input window, operand 1, single buffered']
    #allocation3 [shape = 's32[1]{0}', space=sflag, size = 0x4, scoped, tag = 'scoped memory for discriminator_forward.1']
    %12 = vsyncpa [#allocation3], 0
    // Predicated region
    $region2: #{discriminator_forward.1} parent=1 // pred_check
      _
    $region3: #{discriminator_forward.1} parent=1 // pred_check_branch
      %14 = sbr.rel (0) target = $region5
    $region4: #{discriminator_forward.1} parent=1 // pred_region
      _
    $region5: #{discriminator_forward.1} parent=1 // pred_fallthru
      _
    // Predicated region
    $region6: #{discriminator_forward.1} parent=1 // pred_check
      _
    $region7: #{discriminator_forward.1} parent=1 // pred_check_branch
      %16 = sbr.rel (0) target = $region9
    $region8: #{discriminator_forward.1} parent=1 // pred_region
      %18 = vsyncadd [#allocation3], 0
      %s19 = sshll.u32 %s1, 4
      %s20 = int_to_ptr.hbm [resolvable:$true] %s19
      %s21 = sshll.u32 [#allocation2], 4
      %s22 = int_to_ptr.vmem [resolvable:$true] %s21
      %27 = dma.hbm_to_vmem [thread:$0]  %s20, 8192, %s22, [#allocation3], 64, 64, 4
    $region9: #{discriminator_forward.1} parent=1 // pred_fallthru
      _
    // Predicated region
    $region10: #{discriminator_forward.1} parent=1 // pred_check
      _
    $region11: #{discriminator_forward.1} parent=1 // pred_check_branch
      %29 = sbr.rel (0) target = $region13
    $region12: #{discriminator_forward.1} parent=1 // pred_region
      _
    $region13: #{discriminator_forward.1} parent=1 // pred_fallthru
      _
    // Predicated region
    $region14: #{discriminator_forward.1} parent=1 // pred_check
      _
    $region15: #{discriminator_forward.1} parent=1 // pred_check_branch
      %31 = sbr.rel (0) target = $region17
    $region16: #{discriminator_forward.1} parent=1 // pred_region
      _
    $region17: #{discriminator_forward.1} parent=1 // pred_fallthru
      _
    // Predicated region
    $region18: #{discriminator_forward.1} parent=1 // pred_check
      _
    $region19: #{discriminator_forward.1} parent=1 // pred_check_branch
      %33 = sbr.rel (0) target = $region21
    $region20: #{discriminator_forward.1} parent=1 // pred_region
      _
    $region21: #{discriminator_forward.1} parent=1 // pred_fallthru
      _
    // Predicated region
    $region22: #{discriminator_forward.1} parent=1 // pred_check
      _
    $region23: #{discriminator_forward.1} parent=1 // pred_check_branch
      %35 = sbr.rel (0) target = $region25
    $region24: #{discriminator_forward.1} parent=1 // pred_region
      _
    $region25: #{discriminator_forward.1} parent=1 // pred_fallthru
      _
    // Predicated region
    $region26: #{discriminator_forward.1} parent=1 // pred_check
      _
    $region27: #{discriminator_forward.1} parent=1 // pred_check_branch
      %37 = sbr.rel (0) target = $region29
    $region28: #{discriminator_forward.1} parent=1 // pred_region
      _
    $region29: #{discriminator_forward.1} parent=1 // pred_fallthru
      _
    // Predicated region
    $region30: #{discriminator_forward.1} parent=1 // pred_check
      _
    $region31: #{discriminator_forward.1} parent=1 // pred_check_branch
      %39 = sbr.rel (0) target = $region33
    $region32: #{discriminator_forward.1} parent=1 // pred_region
      %41 = dma.done [#allocation3], 8192
    $region33: #{discriminator_forward.1} parent=1 // pred_fallthru
      _
    %v42 = vld [vmem:[%s0] sm:$0xff]
    %v43 = vld [vmem:[%s0 + $0x8] sm:$0xff]
    %v44 = vld [vmem:[%s0 + $0x10] sm:$0xff]
    %v45 = vld [vmem:[%s0 + $0x18] sm:$0xff]
    %v46 = vld [vmem:[%s0 + $0x20] sm:$0xff]
    %v47 = vld [vmem:[%s0 + $0x28] sm:$0xff]
    %v48 = vld [vmem:[%s0 + $0x30] sm:$0xff]
    %v49 = vld [vmem:[%s0 + $0x38] sm:$0xff]
    %v50 = vld [vmem:[%s0 + $0x40] sm:$0xff]
    %v51 = vld [vmem:[%s0 + $0x48] sm:$0xff]
    %v52 = vld [vmem:[%s0 + $0x50] sm:$0xff]
    %v53 = vld [vmem:[%s0 + $0x58] sm:$0xff]
    %v54 = vld [vmem:[%s0 + $0x60] sm:$0xff]
    %v55 = vld [vmem:[%s0 + $0x68] sm:$0xff]
    %v56 = vld [vmem:[%s0 + $0x70] sm:$0xff]
    %v57 = vld [vmem:[%s0 + $0x78] sm:$0xff]
    %v58 = vpack.c.bf16 %v50, %v42
    %v59 = vpack.c.bf16 %v51, %v43
    %v60 = vpack.c.bf16 %v52, %v44
    %v61 = vpack.c.bf16 %v53, %v45
    %v62 = vpack.c.bf16 %v54, %v46
    %v63 = vpack.c.bf16 %v55, %v47
    %v64 = vpack.c.bf16 %v56, %v48
    %v65 = vpack.c.bf16 %v57, %v49
    %v66 = vld [vmem:[#allocation2] sm:$0xf]
    %v67 = vld [vmem:[#allocation2 + $0x4] sm:$0xf]
    %v68 = vld [vmem:[#allocation2 + $0x8] sm:$0xf]
    %v69 = vld [vmem:[#allocation2 + $0xc] sm:$0xf]
    %v70 = vld [vmem:[#allocation2 + $0x10] sm:$0xf]
    %v71 = vld [vmem:[#allocation2 + $0x14] sm:$0xf]
    %v72 = vld [vmem:[#allocation2 + $0x18] sm:$0xf]
    %v73 = vld [vmem:[#allocation2 + $0x1c] sm:$0xf]
    %v74 = vld [vmem:[#allocation2 + $0x20] sm:$0xf]
    %v75 = vld [vmem:[#allocation2 + $0x24] sm:$0xf]
    %v76 = vld [vmem:[#allocation2 + $0x28] sm:$0xf]
    %v77 = vld [vmem:[#allocation2 + $0x2c] sm:$0xf]
    %v78 = vld [vmem:[#allocation2 + $0x30] sm:$0xf]
    %v79 = vld [vmem:[#allocation2 + $0x34] sm:$0xf]
    %v80 = vld [vmem:[#allocation2 + $0x38] sm:$0xf]
    %v81 = vld [vmem:[#allocation2 + $0x3c] sm:$0xf]
    %v82 = vld [vmem:[#allocation2 + $0x40] sm:$0xf]
    %v83 = vld [vmem:[#allocation2 + $0x44] sm:$0xf]
    %v84 = vld [vmem:[#allocation2 + $0x48] sm:$0xf]
    %v85 = vld [vmem:[#allocation2 + $0x4c] sm:$0xf]
    %v86 = vld [vmem:[#allocation2 + $0x50] sm:$0xf]
    %v87 = vld [vmem:[#allocation2 + $0x54] sm:$0xf]
    %v88 = vld [vmem:[#allocation2 + $0x58] sm:$0xf]
    %v89 = vld [vmem:[#allocation2 + $0x5c] sm:$0xf]
    %v90 = vld [vmem:[#allocation2 + $0x60] sm:$0xf]
    %v91 = vld [vmem:[#allocation2 + $0x64] sm:$0xf]
    %v92 = vld [vmem:[#allocation2 + $0x68] sm:$0xf]
    %v93 = vld [vmem:[#allocation2 + $0x6c] sm:$0xf]
    %v94 = vld [vmem:[#allocation2 + $0x70] sm:$0xf]
    %v95 = vld [vmem:[#allocation2 + $0x74] sm:$0xf]
    %v96 = vld [vmem:[#allocation2 + $0x78] sm:$0xf]
    %v97 = vld [vmem:[#allocation2 + $0x7c] sm:$0xf]
    %v98 = vld [vmem:[#allocation2 + $0x80] sm:$0xf]
    %v99 = vld [vmem:[#allocation2 + $0x84] sm:$0xf]
    %v100 = vld [vmem:[#allocation2 + $0x88] sm:$0xf]
    %v101 = vld [vmem:[#allocation2 + $0x8c] sm:$0xf]
    %v102 = vld [vmem:[#allocation2 + $0x90] sm:$0xf]
    %v103 = vld [vmem:[#allocation2 + $0x94] sm:$0xf]
    %v104 = vld [vmem:[#allocation2 + $0x98] sm:$0xf]
    %v105 = vld [vmem:[#allocation2 + $0x9c] sm:$0xf]
    %v106 = vld [vmem:[#allocation2 + $0xa0] sm:$0xf]
    %v107 = vld [vmem:[#allocation2 + $0xa4] sm:$0xf]
    %v108 = vld [vmem:[#allocation2 + $0xa8] sm:$0xf]
    %v109 = vld [vmem:[#allocation2 + $0xac] sm:$0xf]
    %v110 = vld [vmem:[#allocation2 + $0xb0] sm:$0xf]
    %v111 = vld [vmem:[#allocation2 + $0xb4] sm:$0xf]
    %v112 = vld [vmem:[#allocation2 + $0xb8] sm:$0xf]
    %v113 = vld [vmem:[#allocation2 + $0xbc] sm:$0xf]
    %v114 = vld [vmem:[#allocation2 + $0xc0] sm:$0xf]
    %v115 = vld [vmem:[#allocation2 + $0xc4] sm:$0xf]
    %v116 = vld [vmem:[#allocation2 + $0xc8] sm:$0xf]
    %v117 = vld [vmem:[#allocation2 + $0xcc] sm:$0xf]
    %v118 = vld [vmem:[#allocation2 + $0xd0] sm:$0xf]
    %v119 = vld [vmem:[#allocation2 + $0xd4] sm:$0xf]
    %v120 = vld [vmem:[#allocation2 + $0xd8] sm:$0xf]
    %v121 = vld [vmem:[#allocation2 + $0xdc] sm:$0xf]
    %v122 = vld [vmem:[#allocation2 + $0xe0] sm:$0xf]
    %v123 = vld [vmem:[#allocation2 + $0xe4] sm:$0xf]
    %v124 = vld [vmem:[#allocation2 + $0xe8] sm:$0xf]
    %v125 = vld [vmem:[#allocation2 + $0xec] sm:$0xf]
    %v126 = vld [vmem:[#allocation2 + $0xf0] sm:$0xf]
    %v127 = vld [vmem:[#allocation2 + $0xf4] sm:$0xf]
    %v128 = vld [vmem:[#allocation2 + $0xf8] sm:$0xf]
    %v129 = vld [vmem:[#allocation2 + $0xfc] sm:$0xf]
    %v130 = vld [vmem:[#allocation2 + $0x100] sm:$0xf]
    %v131 = vld [vmem:[#allocation2 + $0x104] sm:$0xf]
    %v132 = vld [vmem:[#allocation2 + $0x108] sm:$0xf]
    %v133 = vld [vmem:[#allocation2 + $0x10c] sm:$0xf]
    %v134 = vld [vmem:[#allocation2 + $0x110] sm:$0xf]
    %v135 = vld [vmem:[#allocation2 + $0x114] sm:$0xf]
    %v136 = vld [vmem:[#allocation2 + $0x118] sm:$0xf]
    %v137 = vld [vmem:[#allocation2 + $0x11c] sm:$0xf]
    %v138 = vld [vmem:[#allocation2 + $0x120] sm:$0xf]
    %v139 = vld [vmem:[#allocation2 + $0x124] sm:$0xf]
    %v140 = vld [vmem:[#allocation2 + $0x128] sm:$0xf]
    %v141 = vld [vmem:[#allocation2 + $0x12c] sm:$0xf]
    %v142 = vld [vmem:[#allocation2 + $0x130] sm:$0xf]
    %v143 = vld [vmem:[#allocation2 + $0x134] sm:$0xf]
    %v144 = vld [vmem:[#allocation2 + $0x138] sm:$0xf]
    %v145 = vld [vmem:[#allocation2 + $0x13c] sm:$0xf]
    %v146 = vld [vmem:[#allocation2 + $0x140] sm:$0xf]
    %v147 = vld [vmem:[#allocation2 + $0x144] sm:$0xf]
    %v148 = vld [vmem:[#allocation2 + $0x148] sm:$0xf]
    %v149 = vld [vmem:[#allocation2 + $0x14c] sm:$0xf]
    %v150 = vld [vmem:[#allocation2 + $0x150] sm:$0xf]
    %v151 = vld [vmem:[#allocation2 + $0x154] sm:$0xf]
    %v152 = vld [vmem:[#allocation2 + $0x158] sm:$0xf]
    %v153 = vld [vmem:[#allocation2 + $0x15c] sm:$0xf]
    %v154 = vld [vmem:[#allocation2 + $0x160] sm:$0xf]
    %v155 = vld [vmem:[#allocation2 + $0x164] sm:$0xf]
    %v156 = vld [vmem:[#allocation2 + $0x168] sm:$0xf]
    %v157 = vld [vmem:[#allocation2 + $0x16c] sm:$0xf]
    %v158 = vld [vmem:[#allocation2 + $0x170] sm:$0xf]
    %v159 = vld [vmem:[#allocation2 + $0x174] sm:$0xf]
    %v160 = vld [vmem:[#allocation2 + $0x178] sm:$0xf]
    %v161 = vld [vmem:[#allocation2 + $0x17c] sm:$0xf]
    %v162 = vld [vmem:[#allocation2 + $0x180] sm:$0xf]
    %v163 = vld [vmem:[#allocation2 + $0x184] sm:$0xf]
    %v164 = vld [vmem:[#allocation2 + $0x188] sm:$0xf]
    %v165 = vld [vmem:[#allocation2 + $0x18c] sm:$0xf]
    %v166 = vld [vmem:[#allocation2 + $0x190] sm:$0xf]
    %v167 = vld [vmem:[#allocation2 + $0x194] sm:$0xf]
    %v168 = vld [vmem:[#allocation2 + $0x198] sm:$0xf]
    %v169 = vld [vmem:[#allocation2 + $0x19c] sm:$0xf]
    %v170 = vld [vmem:[#allocation2 + $0x1a0] sm:$0xf]
    %v171 = vld [vmem:[#allocation2 + $0x1a4] sm:$0xf]
    %v172 = vld [vmem:[#allocation2 + $0x1a8] sm:$0xf]
    %v173 = vld [vmem:[#allocation2 + $0x1ac] sm:$0xf]
    %v174 = vld [vmem:[#allocation2 + $0x1b0] sm:$0xf]
    %v175 = vld [vmem:[#allocation2 + $0x1b4] sm:$0xf]
    %v176 = vld [vmem:[#allocation2 + $0x1b8] sm:$0xf]
    %v177 = vld [vmem:[#allocation2 + $0x1bc] sm:$0xf]
    %v178 = vld [vmem:[#allocation2 + $0x1c0] sm:$0xf]
    %v179 = vld [vmem:[#allocation2 + $0x1c4] sm:$0xf]
    %v180 = vld [vmem:[#allocation2 + $0x1c8] sm:$0xf]
    %v181 = vld [vmem:[#allocation2 + $0x1cc] sm:$0xf]
    %v182 = vld [vmem:[#allocation2 + $0x1d0] sm:$0xf]
    %v183 = vld [vmem:[#allocation2 + $0x1d4] sm:$0xf]
    %v184 = vld [vmem:[#allocation2 + $0x1d8] sm:$0xf]
    %v185 = vld [vmem:[#allocation2 + $0x1dc] sm:$0xf]
    %v186 = vld [vmem:[#allocation2 + $0x1e0] sm:$0xf]
    %v187 = vld [vmem:[#allocation2 + $0x1e4] sm:$0xf]
    %v188 = vld [vmem:[#allocation2 + $0x1e8] sm:$0xf]
    %v189 = vld [vmem:[#allocation2 + $0x1ec] sm:$0xf]
    %v190 = vld [vmem:[#allocation2 + $0x1f0] sm:$0xf]
    %v191 = vld [vmem:[#allocation2 + $0x1f4] sm:$0xf]
    %v192 = vld [vmem:[#allocation2 + $0x1f8] sm:$0xf]
    %v193 = vld [vmem:[#allocation2 + $0x1fc] sm:$0xf]
    %v194 = vld [vmem:[%s2] sm:$0x1]
    %v196 = vperm.slane %v194, 0
    %v326 = vunpack.c.l.b16 %v66
    %v327 = vunpack.c.l.b16 %v67
    %v328 = vunpack.c.l.b16 %v68
    %v329 = vunpack.c.l.b16 %v69
    %v330 = vunpack.c.l.b16 %v70
    %v331 = vunpack.c.l.b16 %v71
    %v332 = vunpack.c.l.b16 %v72
    %v333 = vunpack.c.l.b16 %v73
    %v334 = vunpack.c.l.b16 %v74
    %v335 = vunpack.c.l.b16 %v75
    %v336 = vunpack.c.l.b16 %v76
    %v337 = vunpack.c.l.b16 %v77
    %v338 = vunpack.c.l.b16 %v78
    %v339 = vunpack.c.l.b16 %v79
    %v340 = vunpack.c.l.b16 %v80
    %v341 = vunpack.c.l.b16 %v81
    %v342 = vunpack.c.l.b16 %v82
    %v343 = vunpack.c.l.b16 %v83
    %v344 = vunpack.c.l.b16 %v84
    %v345 = vunpack.c.l.b16 %v85
    %v346 = vunpack.c.l.b16 %v86
    %v347 = vunpack.c.l.b16 %v87
    %v348 = vunpack.c.l.b16 %v88
    %v349 = vunpack.c.l.b16 %v89
    %v350 = vunpack.c.l.b16 %v90
    %v351 = vunpack.c.l.b16 %v91
    %v352 = vunpack.c.l.b16 %v92
    %v353 = vunpack.c.l.b16 %v93
    %v354 = vunpack.c.l.b16 %v94
    %v355 = vunpack.c.l.b16 %v95
    %v356 = vunpack.c.l.b16 %v96
    %v357 = vunpack.c.l.b16 %v97
    %v358 = vunpack.c.l.b16 %v98
    %v359 = vunpack.c.l.b16 %v99
    %v360 = vunpack.c.l.b16 %v100
    %v361 = vunpack.c.l.b16 %v101
    %v362 = vunpack.c.l.b16 %v102
    %v363 = vunpack.c.l.b16 %v103
    %v364 = vunpack.c.l.b16 %v104
    %v365 = vunpack.c.l.b16 %v105
    %v366 = vunpack.c.l.b16 %v106
    %v367 = vunpack.c.l.b16 %v107
    %v368 = vunpack.c.l.b16 %v108
    %v369 = vunpack.c.l.b16 %v109
    %v370 = vunpack.c.l.b16 %v110
    %v371 = vunpack.c.l.b16 %v111
    %v372 = vunpack.c.l.b16 %v112
    %v373 = vunpack.c.l.b16 %v113
    %v374 = vunpack.c.l.b16 %v114
    %v375 = vunpack.c.l.b16 %v115
    %v376 = vunpack.c.l.b16 %v116
    %v377 = vunpack.c.l.b16 %v117
    %v378 = vunpack.c.l.b16 %v118
    %v379 = vunpack.c.l.b16 %v119
    %v380 = vunpack.c.l.b16 %v120
    %v381 = vunpack.c.l.b16 %v121
    %v382 = vunpack.c.l.b16 %v122
    %v383 = vunpack.c.l.b16 %v123
    %v384 = vunpack.c.l.b16 %v124
    %v385 = vunpack.c.l.b16 %v125
    %v386 = vunpack.c.l.b16 %v126
    %v387 = vunpack.c.l.b16 %v127
    %v388 = vunpack.c.l.b16 %v128
    %v389 = vunpack.c.l.b16 %v129
    %v390 = vunpack.c.l.b16 %v130
    %v391 = vunpack.c.l.b16 %v131
    %v392 = vunpack.c.l.b16 %v132
    %v393 = vunpack.c.l.b16 %v133
    %v394 = vunpack.c.l.b16 %v134
    %v395 = vunpack.c.l.b16 %v135
    %v396 = vunpack.c.l.b16 %v136
    %v397 = vunpack.c.l.b16 %v137
    %v398 = vunpack.c.l.b16 %v138
    %v399 = vunpack.c.l.b16 %v139
    %v400 = vunpack.c.l.b16 %v140
    %v401 = vunpack.c.l.b16 %v141
    %v402 = vunpack.c.l.b16 %v142
    %v403 = vunpack.c.l.b16 %v143
    %v404 = vunpack.c.l.b16 %v144
    %v405 = vunpack.c.l.b16 %v145
    %v406 = vunpack.c.l.b16 %v146
    %v407 = vunpack.c.l.b16 %v147
    %v408 = vunpack.c.l.b16 %v148
    %v409 = vunpack.c.l.b16 %v149
    %v410 = vunpack.c.l.b16 %v150
    %v411 = vunpack.c.l.b16 %v151
    %v412 = vunpack.c.l.b16 %v152
    %v413 = vunpack.c.l.b16 %v153
    %v414 = vunpack.c.l.b16 %v154
    %v415 = vunpack.c.l.b16 %v155
    %v416 = vunpack.c.l.b16 %v156
    %v417 = vunpack.c.l.b16 %v157
    %v418 = vunpack.c.l.b16 %v158
    %v419 = vunpack.c.l.b16 %v159
    %v420 = vunpack.c.l.b16 %v160
    %v421 = vunpack.c.l.b16 %v161
    %v422 = vunpack.c.l.b16 %v162
    %v423 = vunpack.c.l.b16 %v163
    %v424 = vunpack.c.l.b16 %v164
    %v425 = vunpack.c.l.b16 %v165
    %v426 = vunpack.c.l.b16 %v166
    %v427 = vunpack.c.l.b16 %v167
    %v428 = vunpack.c.l.b16 %v168
    %v429 = vunpack.c.l.b16 %v169
    %v430 = vunpack.c.l.b16 %v170
    %v431 = vunpack.c.l.b16 %v171
    %v432 = vunpack.c.l.b16 %v172
    %v433 = vunpack.c.l.b16 %v173
    %v434 = vunpack.c.l.b16 %v174
    %v435 = vunpack.c.l.b16 %v175
    %v436 = vunpack.c.l.b16 %v176
    %v437 = vunpack.c.l.b16 %v177
    %v438 = vunpack.c.l.b16 %v178
    %v439 = vunpack.c.l.b16 %v179
    %v440 = vunpack.c.l.b16 %v180
    %v441 = vunpack.c.l.b16 %v181
    %v442 = vunpack.c.l.b16 %v182
    %v443 = vunpack.c.l.b16 %v183
    %v444 = vunpack.c.l.b16 %v184
    %v445 = vunpack.c.l.b16 %v185
    %v446 = vunpack.c.l.b16 %v186
    %v447 = vunpack.c.l.b16 %v187
    %v448 = vunpack.c.l.b16 %v188
    %v449 = vunpack.c.l.b16 %v189
    %v450 = vunpack.c.l.b16 %v190
    %v451 = vunpack.c.l.b16 %v191
    %v452 = vunpack.c.l.b16 %v192
    %v453 = vunpack.c.l.b16 %v193
    %v454 = vpack.c.b16 %v327, %v326
    %v455 = vpack.c.b16 %v329, %v328
    %v456 = vpack.c.b16 %v331, %v330
    %v457 = vpack.c.b16 %v333, %v332
    %v458 = vpack.c.b16 %v335, %v334
    %v459 = vpack.c.b16 %v337, %v336
    %v460 = vpack.c.b16 %v339, %v338
    %v461 = vpack.c.b16 %v341, %v340
    %v462 = vpack.c.b16 %v343, %v342
    %v463 = vpack.c.b16 %v345, %v344
    %v464 = vpack.c.b16 %v347, %v346
    %v465 = vpack.c.b16 %v349, %v348
    %v466 = vpack.c.b16 %v351, %v350
    %v467 = vpack.c.b16 %v353, %v352
    %v468 = vpack.c.b16 %v355, %v354
    %v469 = vpack.c.b16 %v357, %v356
    %v470 = vpack.c.b16 %v359, %v358
    %v471 = vpack.c.b16 %v361, %v360
    %v472 = vpack.c.b16 %v363, %v362
    %v473 = vpack.c.b16 %v365, %v364
    %v474 = vpack.c.b16 %v367, %v366
    %v475 = vpack.c.b16 %v369, %v368
    %v476 = vpack.c.b16 %v371, %v370
    %v477 = vpack.c.b16 %v373, %v372
    %v478 = vpack.c.b16 %v375, %v374
    %v479 = vpack.c.b16 %v377, %v376
    %v480 = vpack.c.b16 %v379, %v378
    %v481 = vpack.c.b16 %v381, %v380
    %v482 = vpack.c.b16 %v383, %v382
    %v483 = vpack.c.b16 %v385, %v384
    %v484 = vpack.c.b16 %v387, %v386
    %v485 = vpack.c.b16 %v389, %v388
    %v486 = vpack.c.b16 %v391, %v390
    %v487 = vpack.c.b16 %v393, %v392
    %v488 = vpack.c.b16 %v395, %v394
    %v489 = vpack.c.b16 %v397, %v396
    %v490 = vpack.c.b16 %v399, %v398
    %v491 = vpack.c.b16 %v401, %v400
    %v492 = vpack.c.b16 %v403, %v402
    %v493 = vpack.c.b16 %v405, %v404
    %v494 = vpack.c.b16 %v407, %v406
    %v495 = vpack.c.b16 %v409, %v408
    %v496 = vpack.c.b16 %v411, %v410
    %v497 = vpack.c.b16 %v413, %v412
    %v498 = vpack.c.b16 %v415, %v414
    %v499 = vpack.c.b16 %v417, %v416
    %v500 = vpack.c.b16 %v419, %v418
    %v501 = vpack.c.b16 %v421, %v420
    %v502 = vpack.c.b16 %v423, %v422
    %v503 = vpack.c.b16 %v425, %v424
    %v504 = vpack.c.b16 %v427, %v426
    %v505 = vpack.c.b16 %v429, %v428
    %v506 = vpack.c.b16 %v431, %v430
    %v507 = vpack.c.b16 %v433, %v432
    %v508 = vpack.c.b16 %v435, %v434
    %v509 = vpack.c.b16 %v437, %v436
    %v510 = vpack.c.b16 %v439, %v438
    %v511 = vpack.c.b16 %v441, %v440
    %v512 = vpack.c.b16 %v443, %v442
    %v513 = vpack.c.b16 %v445, %v444
    %v514 = vpack.c.b16 %v447, %v446
    %v515 = vpack.c.b16 %v449, %v448
    %v516 = vpack.c.b16 %v451, %v450
    %v517 = vpack.c.b16 %v453, %v452
    %582 = vmatpush.bf16.msra.mxu0 %v461
    %583 = vmatpush.bf16.msra.mxu0 %v460
    %584 = vmatpush.bf16.msra.mxu0 %v459
    %585 = vmatpush.bf16.msra.mxu0 %v458
    %586 = vmatpush.bf16.msra.mxu0 %v457
    %587 = vmatpush.bf16.msra.mxu0 %v456
    %588 = vmatpush.bf16.msra.mxu0 %v455
    %589 = vmatpush.bf16.msra.mxu0 %v454
    %590 = vmatmul.bf16.gmra.mxu0 %v58
    %v591 = vpop.f32.mrf.mxu0
    %v592 = vadd.f32 %v196, %v591
    %v593 = vpop.f32.mrf.mxu0
    %v594 = vadd.f32 %v196, %v593
    %595 = vdwg.mxu0
    %596 = vmatpush.bf16.msra.mxu0 %v469
    %597 = vmatpush.bf16.msra.mxu0 %v468
    %598 = vmatpush.bf16.msra.mxu0 %v467
    %599 = vmatpush.bf16.msra.mxu0 %v466
    %600 = vmatpush.bf16.msra.mxu0 %v465
    %601 = vmatpush.bf16.msra.mxu0 %v464
    %602 = vmatpush.bf16.msra.mxu0 %v463
    %603 = vmatpush.bf16.msra.mxu0 %v462
    %604 = vmatmul.bf16.gmra.mxu0 %v59
    %v605 = vpop.f32.mrf.mxu0
    %v606 = vadd.f32 %v592, %v605
    %v607 = vpop.f32.mrf.mxu0
    %v608 = vadd.f32 %v594, %v607
    %609 = vdwg.mxu0
    %610 = vmatpush.bf16.msra.mxu0 %v477
    %611 = vmatpush.bf16.msra.mxu0 %v476
    %612 = vmatpush.bf16.msra.mxu0 %v475
    %613 = vmatpush.bf16.msra.mxu0 %v474
    %614 = vmatpush.bf16.msra.mxu0 %v473
    %615 = vmatpush.bf16.msra.mxu0 %v472
    %616 = vmatpush.bf16.msra.mxu0 %v471
    %617 = vmatpush.bf16.msra.mxu0 %v470
    %618 = vmatmul.bf16.gmra.mxu0 %v60
    %v619 = vpop.f32.mrf.mxu0
    %v620 = vadd.f32 %v606, %v619
    %v621 = vpop.f32.mrf.mxu0
    %v622 = vadd.f32 %v608, %v621
    %623 = vdwg.mxu0
    %624 = vmatpush.bf16.msra.mxu0 %v485
    %625 = vmatpush.bf16.msra.mxu0 %v484
    %626 = vmatpush.bf16.msra.mxu0 %v483
    %627 = vmatpush.bf16.msra.mxu0 %v482
    %628 = vmatpush.bf16.msra.mxu0 %v481
    %629 = vmatpush.bf16.msra.mxu0 %v480
    %630 = vmatpush.bf16.msra.mxu0 %v479
    %631 = vmatpush.bf16.msra.mxu0 %v478
    %632 = vmatmul.bf16.gmra.mxu0 %v61
    %v633 = vpop.f32.mrf.mxu0
    %v634 = vadd.f32 %v620, %v633
    %v635 = vpop.f32.mrf.mxu0
    %v636 = vadd.f32 %v622, %v635
    %637 = vdwg.mxu0
    %638 = vmatpush.bf16.msra.mxu0 %v493
    %639 = vmatpush.bf16.msra.mxu0 %v492
    %640 = vmatpush.bf16.msra.mxu0 %v491
    %641 = vmatpush.bf16.msra.mxu0 %v490
    %642 = vmatpush.bf16.msra.mxu0 %v489
    %643 = vmatpush.bf16.msra.mxu0 %v488
    %644 = vmatpush.bf16.msra.mxu0 %v487
    %645 = vmatpush.bf16.msra.mxu0 %v486
    %646 = vmatmul.bf16.gmra.mxu0 %v62
    %v647 = vpop.f32.mrf.mxu0
    %v648 = vadd.f32 %v634, %v647
    %v649 = vpop.f32.mrf.mxu0
    %v650 = vadd.f32 %v636, %v649
    %651 = vdwg.mxu0
    %652 = vmatpush.bf16.msra.mxu0 %v501
    %653 = vmatpush.bf16.msra.mxu0 %v500
    %654 = vmatpush.bf16.msra.mxu0 %v499
    %655 = vmatpush.bf16.msra.mxu0 %v498
    %656 = vmatpush.bf16.msra.mxu0 %v497
    %657 = vmatpush.bf16.msra.mxu0 %v496
    %658 = vmatpush.bf16.msra.mxu0 %v495
    %659 = vmatpush.bf16.msra.mxu0 %v494
    %660 = vmatmul.bf16.gmra.mxu0 %v63
    %v661 = vpop.f32.mrf.mxu0
    %v662 = vadd.f32 %v648, %v661
    %v663 = vpop.f32.mrf.mxu0
    %v664 = vadd.f32 %v650, %v663
    %665 = vdwg.mxu0
    %666 = vmatpush.bf16.msra.mxu0 %v509
    %667 = vmatpush.bf16.msra.mxu0 %v508
    %668 = vmatpush.bf16.msra.mxu0 %v507
    %669 = vmatpush.bf16.msra.mxu0 %v506
    %670 = vmatpush.bf16.msra.mxu0 %v505
    %671 = vmatpush.bf16.msra.mxu0 %v504
    %672 = vmatpush.bf16.msra.mxu0 %v503
    %673 = vmatpush.bf16.msra.mxu0 %v502
    %674 = vmatmul.bf16.gmra.mxu0 %v64
    %v675 = vpop.f32.mrf.mxu0
    %v676 = vadd.f32 %v662, %v675
    %v677 = vpop.f32.mrf.mxu0
    %v678 = vadd.f32 %v664, %v677
    %679 = vdwg.mxu0
    %680 = vmatpush.bf16.msra.mxu0 %v517
    %681 = vmatpush.bf16.msra.mxu0 %v516
    %682 = vmatpush.bf16.msra.mxu0 %v515
    %683 = vmatpush.bf16.msra.mxu0 %v514
    %684 = vmatpush.bf16.msra.mxu0 %v513
    %685 = vmatpush.bf16.msra.mxu0 %v512
    %686 = vmatpush.bf16.msra.mxu0 %v511
    %687 = vmatpush.bf16.msra.mxu0 %v510
    %688 = vmatmul.bf16.gmra.mxu0 %v65
    %v689 = vpop.f32.mrf.mxu0
    %v690 = vadd.f32 %v676, %v689
    %v691 = vpop.f32.mrf.mxu0
    %v692 = vadd.f32 %v678, %v691
    %693 = vdwg.mxu0
    %v694 = vmax.f32 %v690, 0.0
    %v695 = vmax.f32 %v692, 0.0
    %v696 = vpack.c.bf16 %v695, %v694
    %v697 = vld [vmem:[%s3] sm:$0xf]
    %v698 = vld [vmem:[%s3 + $0x4] sm:$0xf]
    %v699 = vld [vmem:[%s3 + $0x8] sm:$0xf]
    %v700 = vld [vmem:[%s3 + $0xc] sm:$0xf]
    %v701 = vld [vmem:[%s3 + $0x10] sm:$0xf]
    %v702 = vld [vmem:[%s3 + $0x14] sm:$0xf]
    %v703 = vld [vmem:[%s3 + $0x18] sm:$0xf]
    %v704 = vld [vmem:[%s3 + $0x1c] sm:$0xf]
    %v705 = vld [vmem:[%s3 + $0x20] sm:$0xf]
    %v706 = vld [vmem:[%s3 + $0x24] sm:$0xf]
    %v707 = vld [vmem:[%s3 + $0x28] sm:$0xf]
    %v708 = vld [vmem:[%s3 + $0x2c] sm:$0xf]
    %v709 = vld [vmem:[%s3 + $0x30] sm:$0xf]
    %v710 = vld [vmem:[%s3 + $0x34] sm:$0xf]
    %v711 = vld [vmem:[%s3 + $0x38] sm:$0xf]
    %v712 = vld [vmem:[%s3 + $0x3c] sm:$0xf]
    %v713 = vld [vmem:[%s4] sm:$0x1]
    %v715 = vperm.slane %v713, 0
    %v733 = vunpack.c.l.b16 %v697
    %v734 = vunpack.c.l.b16 %v698
    %v735 = vunpack.c.l.b16 %v699
    %v736 = vunpack.c.l.b16 %v700
    %v737 = vunpack.c.l.b16 %v701
    %v738 = vunpack.c.l.b16 %v702
    %v739 = vunpack.c.l.b16 %v703
    %v740 = vunpack.c.l.b16 %v704
    %v741 = vunpack.c.l.b16 %v705
    %v742 = vunpack.c.l.b16 %v706
    %v743 = vunpack.c.l.b16 %v707
    %v744 = vunpack.c.l.b16 %v708
    %v745 = vunpack.c.l.b16 %v709
    %v746 = vunpack.c.l.b16 %v710
    %v747 = vunpack.c.l.b16 %v711
    %v748 = vunpack.c.l.b16 %v712
    %v749 = vpack.c.b16 %v734, %v733
    %v750 = vpack.c.b16 %v736, %v735
    %v751 = vpack.c.b16 %v738, %v737
    %v752 = vpack.c.b16 %v740, %v739
    %v753 = vpack.c.b16 %v742, %v741
    %v754 = vpack.c.b16 %v744, %v743
    %v755 = vpack.c.b16 %v746, %v745
    %v756 = vpack.c.b16 %v748, %v747
    %765 = vmatpush.bf16.msra.mxu0 %v756
    %766 = vmatpush.bf16.msra.mxu0 %v755
    %767 = vmatpush.bf16.msra.mxu0 %v754
    %768 = vmatpush.bf16.msra.mxu0 %v753
    %769 = vmatpush.bf16.msra.mxu0 %v752
    %770 = vmatpush.bf16.msra.mxu0 %v751
    %771 = vmatpush.bf16.msra.mxu0 %v750
    %772 = vmatpush.bf16.msra.mxu0 %v749
    %773 = vmatmul.bf16.gmra.mxu0 %v696
    %v774 = vpop.f32.mrf.mxu0
    %v775 = vadd.f32 %v715, %v774
    %v776 = vpop.f32.mrf.mxu0
    %v777 = vadd.f32 %v715, %v776
    %778 = vdwg.mxu0
    %v779 = vmax.f32 %v775, 0.0
    %v780 = vmax.f32 %v777, 0.0
    %v781 = vpack.c.bf16 %v780, %v779
    %v782 = vld [vmem:[%s5] sm:$0xf]
    %v783 = vld [vmem:[%s5 + $0x4] sm:$0xf]
    %v784 = vld [vmem:[%s5 + $0x8] sm:$0xf]
    %v785 = vld [vmem:[%s5 + $0xc] sm:$0xf]
    %v786 = vld [vmem:[%s5 + $0x10] sm:$0xf]
    %v787 = vld [vmem:[%s5 + $0x14] sm:$0xf]
    %v788 = vld [vmem:[%s5 + $0x18] sm:$0xf]
    %v789 = vld [vmem:[%s5 + $0x1c] sm:$0xf]
    %v790 = vld [vmem:[%s5 + $0x20] sm:$0xf]
    %v791 = vld [vmem:[%s5 + $0x24] sm:$0xf]
    %v792 = vld [vmem:[%s5 + $0x28] sm:$0xf]
    %v793 = vld [vmem:[%s5 + $0x2c] sm:$0xf]
    %v794 = vld [vmem:[%s5 + $0x30] sm:$0xf]
    %v795 = vld [vmem:[%s5 + $0x34] sm:$0xf]
    %v796 = vld [vmem:[%s5 + $0x38] sm:$0xf]
    %v797 = vld [vmem:[%s5 + $0x3c] sm:$0xf]
    %v798 = vld [vmem:[%s6] sm:$0x1]
    %v800 = vperm.slane %v798, 0
    %v818 = vunpack.c.l.b16 %v782
    %v819 = vunpack.c.l.b16 %v783
    %v820 = vunpack.c.l.b16 %v784
    %v821 = vunpack.c.l.b16 %v785
    %v822 = vunpack.c.l.b16 %v786
    %v823 = vunpack.c.l.b16 %v787
    %v824 = vunpack.c.l.b16 %v788
    %v825 = vunpack.c.l.b16 %v789
    %v826 = vunpack.c.l.b16 %v790
    %v827 = vunpack.c.l.b16 %v791
    %v828 = vunpack.c.l.b16 %v792
    %v829 = vunpack.c.l.b16 %v793
    %v830 = vunpack.c.l.b16 %v794
    %v831 = vunpack.c.l.b16 %v795
    %v832 = vunpack.c.l.b16 %v796
    %v833 = vunpack.c.l.b16 %v797
    %v834 = vpack.c.b16 %v819, %v818
    %v835 = vpack.c.b16 %v821, %v820
    %v836 = vpack.c.b16 %v823, %v822
    %v837 = vpack.c.b16 %v825, %v824
    %v838 = vpack.c.b16 %v827, %v826
    %v839 = vpack.c.b16 %v829, %v828
    %v840 = vpack.c.b16 %v831, %v830
    %v841 = vpack.c.b16 %v833, %v832
    %850 = vmatpush.bf16.msra.mxu0 %v841
    %851 = vmatpush.bf16.msra.mxu0 %v840
    %852 = vmatpush.bf16.msra.mxu0 %v839
    %853 = vmatpush.bf16.msra.mxu0 %v838
    %854 = vmatpush.bf16.msra.mxu0 %v837
    %855 = vmatpush.bf16.msra.mxu0 %v836
    %856 = vmatpush.bf16.msra.mxu0 %v835
    %857 = vmatpush.bf16.msra.mxu0 %v834
    %858 = vmatmul.bf16.gmra.mxu0 %v781
    %v859 = vpop.f32.mrf.mxu0
    %v860 = vadd.f32 %v800, %v859
    %v861 = vpop.f32.mrf.mxu0
    %v862 = vadd.f32 %v800, %v861
    %863 = vdwg.mxu0
    %v864 = vxor.u32 %v860, 2147483648
    %v865 = vxor.u32 %v862, 2147483648
    %v866 = vmul.f32 %v864, 1.442695
    %v867 = vpow.pop %v866
    %v868 = vmul.f32 %v865, 1.442695
    %v869 = vpow.pop %v868
    %v870 = vadd.f32 %v867, 1.0
    %v871 = vadd.f32 %v869, 1.0
    %v872 = vrcp.pop %v870
    %v873 = vmul.f32 %v870, %v872
    %v874 = vsub.f32 1.0, %v873
    %v875 = vmul.f32 %v872, %v874
    %v876 = vadd.f32 %v872, %v875
    %vm877 = vweird.f32 %v870
    %vm878 = vweird.f32 %v872
    %vm879 = vmor %vm877, %vm878
    %v880 = vsel %vm879, %v872, %v876
    %v881 = vand.u32 2147483647, %v870
    %vm882 = vcmp.eq.f32.partialorder %v881, 8.507059e+37
    %v883 = vand.u32 %v870, 2147483648
    %v884 = vor.u32 1.1754944e-38, %v883
    %v885 = vsel %vm882, %v884, %v880
    %v886 = vmul.f32 1.0, %v885
    %v887 = vrcp.pop %v871
    %v888 = vmul.f32 %v871, %v887
    %v889 = vsub.f32 1.0, %v888
    %v890 = vmul.f32 %v887, %v889
    %v891 = vadd.f32 %v887, %v890
    %vm892 = vweird.f32 %v871
    %vm893 = vweird.f32 %v887
    %vm894 = vmor %vm892, %vm893
    %v895 = vsel %vm894, %v887, %v891
    %v896 = vand.u32 2147483647, %v871
    %vm897 = vcmp.eq.f32.partialorder %v896, 8.507059e+37
    %v898 = vand.u32 %v871, 2147483648
    %v899 = vor.u32 1.1754944e-38, %v898
    %v900 = vsel %vm897, %v899, %v895
    %v901 = vmul.f32 1.0, %v900
    %902 = vst [vmem:[%s7] sm:$0xff] %v886
    %903 = vst [vmem:[%s7 + $0x8] sm:$0xff] %v901
    // Predicated region
    $region34: #{discriminator_forward.1} parent=1 // pred_check
      _
    $region35: #{discriminator_forward.1} parent=1 // pred_check_branch
      %905 = sbr.rel (0) target = $region37
    $region36: #{discriminator_forward.1} parent=1 // pred_region
      _
    $region37: #{discriminator_forward.1} parent=1 // pred_fallthru
      _
    // Predicated region
    $region38: #{discriminator_forward.1} parent=1 // pred_check
      _
    $region39: #{discriminator_forward.1} parent=1 // pred_check_branch
      %907 = sbr.rel (0) target = $region41
    $region40: #{discriminator_forward.1} parent=1 // pred_region
      _
    $region41: #{discriminator_forward.1} parent=1 // pred_fallthru
      _
    %908 = vsyncpa [#allocation3], 1

</llo_original>
